<compile_context>
chip_gen: v7x
topology: tpu7x:2x2x1
jax: 0.10.0
libtpu: 0.0.40
codegen_flags: <defaults>
</compile_context>

<pallas_src>
import functools

import jax
import jax.numpy as jnp
from jax.experimental import pallas as pl
from jax.experimental.pallas import tpu as pltpu


def _round_up(x, m):
    return (x + m - 1) // m * m


def _cdiv(a, b):
    return (a + b - 1) // b


def _balanced_tile(dim, max_tile, align):
    """Aligned tile <= ~max_tile that minimizes padding of `dim`.

    Splits `dim` into ceil(dim / max_tile) near-equal tiles instead of hard max_tile
    tiles, e.g. dim=1032 -> tile 528 (pad 24) instead of 1024 (pad 1016).
    """
    if dim <= max_tile:
        return _round_up(dim, align)
    n_tiles = _cdiv(dim, max_tile)
    return _round_up(_cdiv(dim, n_tiles), align)


def _vmem_limit_bytes():
    """Generation-aware scoped-VMEM limit.

    v5e/v6e have 128 MiB physical VMEM -> allow ~96 MiB so the pipeline can buffer
    deeply; v7x has 64 MiB per TensorCore -> ~48 MiB. Falls back to the known-good
    32 MiB default if the hardware query is unavailable.
    """
    try:
        cap = int(pltpu.get_tpu_info().vmem_capacity_bytes)
        return max(32 * 1024 * 1024, min(96 * 1024 * 1024, (cap * 3) // 4))
    except Exception:
        return 32 * 1024 * 1024


def _matmul_leaky_kernel(a_ref, b_ref, o_ref, acc_ref, *, negative_slope):
    """One (tm,tk)x(tk,tn) MXU step, accumulated in an f32 VMEM scratch.

    K is the innermost ("arbitrary") grid axis: the accumulator is zeroed at k==0 and
    the LeakyReLU epilogue + cast + store happen only on the last K step.
    """
    k = pl.program_id(2)

    @pl.when(k == 0)
    def _init():
        acc_ref[...] = jnp.zeros_like(acc_ref)

    acc_ref[...] += jnp.dot(a_ref[...], b_ref[...],
                            preferred_element_type=jnp.float32)

    @pl.when(k == pl.num_programs(2) - 1)
    def _finalize():
        acc = acc_ref[...]
        # Epilogue stays in f32 on the VPU, then casts once to the output dtype.
        o_ref[...] = jnp.where(acc >= 0.0, acc, negative_slope * acc).astype(o_ref.dtype)


def _matmul_leaky_single_step_kernel(a_ref, b_ref, o_ref, *, negative_slope):
    """Whole K fits one tile: no scratch, no zero-init, no accumulator re-read."""
    acc = jnp.dot(a_ref[...], b_ref[...], preferred_element_type=jnp.float32)
    o_ref[...] = jnp.where(acc >= 0.0, acc, negative_slope * acc).astype(o_ref.dtype)


def _conv_matmul_leaky(a, b, out_dtype, *, negative_slope=0.2,
                       tm_max=1024, tk_max=1024, tn_max=512):
    """LeakyReLU(a @ b): a is the (M, K) patch matrix, b the (K, C_out) weight."""
    m, k = a.shape
    k2, n = b.shape
    assert k == k2, (a.shape, b.shape)

    # Balanced tiles: 16-aligned M (bf16 sublane packing), lane-dense 128-aligned N.
    tm = _balanced_tile(m, tm_max, 16)
    tn = _balanced_tile(n, tn_max, 128)
    mp = _round_up(m, tm)
    np_ = _round_up(n, tn)

    if k <= tk_max:
        # Full-extent K block (block last dim == full array dim satisfies the
        # (8,128)-or-full rule): no K padding, no wasted A traffic / zero-FLOPs.
        tk, kp = k, k
    else:
        tk = _balanced_tile(k, tk_max, 128)
        kp = _round_up(k, tk)

    # Zero padding is exact for the matmul; padded rows/cols are sliced off afterwards.
    if (mp, kp) != (m, k):
        a = jnp.pad(a, ((0, mp - m), (0, kp - k)))
    if (kp, np_) != (k, n):
        b = jnp.pad(b, ((0, kp - k), (0, np_ - n)))

    n_k_steps = kp // tk

    cost = pl.CostEstimate(
        flops=2 * m * k * n,
        transcendentals=0,
        bytes_accessed=(m * k * a.dtype.itemsize
                        + k * n * b.dtype.itemsize
                        + m * n * jnp.dtype(out_dtype).itemsize),
    )

    if n_k_steps == 1:
        grid_spec = pltpu.PrefetchScalarGridSpec(
            num_scalar_prefetch=0,
            grid=(mp // tm, np_ // tn),
            in_specs=[
                pl.BlockSpec((tm, tk), lambda i, j: (i, 0)),
                # Weight tile: independent of the M axis -> fetched once per N tile.
                pl.BlockSpec((tk, tn), lambda i, j: (0, j)),
            ],
            out_specs=pl.BlockSpec((tm, tn), lambda i, j: (i, j)),
        )
        kernel = functools.partial(_matmul_leaky_single_step_kernel,
                                   negative_slope=negative_slope)
        dims = ("parallel", "parallel")
    else:
        grid_spec = pltpu.PrefetchScalarGridSpec(
            num_scalar_prefetch=0,
            grid=(mp // tm, np_ // tn, n_k_steps),
            in_specs=[
                pl.BlockSpec((tm, tk), lambda i, j, kk: (i, kk)),
                pl.BlockSpec((tk, tn), lambda i, j, kk: (kk, j)),
            ],
            out_specs=pl.BlockSpec((tm, tn), lambda i, j, kk: (i, j)),
            scratch_shapes=[pltpu.VMEM((tm, tn), jnp.float32)],
        )
        kernel = functools.partial(_matmul_leaky_kernel,
                                   negative_slope=negative_slope)
        dims = ("parallel", "parallel", "arbitrary")

    out = pl.pallas_call(
        kernel,
        out_shape=jax.ShapeDtypeStruct((mp, np_), out_dtype),
        grid_spec=grid_spec,
        compiler_params=pltpu.CompilerParams(
            dimension_semantics=dims,
            vmem_limit_bytes=_vmem_limit_bytes(),
        ),
        cost_estimate=cost,
    )(a, b)

    if (mp, np_) != (m, n):
        out = out[:m, :n]
    return out


def _im2col_nhwc(x_nhwc, kh=4, kw=4, stride=2, pad=1):
    """Extract kh x kw / stride patches (zero pad). Returns (N*OH*OW, KH*KW*C)."""
    n, h, w, c = x_nhwc.shape
    xp = jnp.pad(x_nhwc, ((0, 0), (pad, pad), (pad, pad), (0, 0)))
    oh = (h + 2 * pad - kh) // stride + 1
    ow = (w + 2 * pad - kw) // stride + 1
    cols = []
    for i in range(kh):
        for j in range(kw):
            cols.append(xp[:, i:i + stride * oh:stride, j:j + stride * ow:stride, :])
    patches = jnp.stack(cols, axis=3)                 # (N, OH, OW, KH*KW, C)
    return patches.reshape(n * oh * ow, kh * kw * c), (n, oh, ow)


def downsample_forward_nhwc(x_nhwc, weight_oihw, *, compute_dtype=jnp.bfloat16,
                            out_dtype=None, negative_slope=0.2):
    """Conv2d(k=4, s=2, p=1, bias=False) + LeakyReLU(0.2). NHWC in -> NHWC out.

    compute_dtype: MXU operand dtype. Default bf16 (f32 accumulation) is fast but
      changes numerics slightly vs PyTorch f32; pass jnp.float32 for f32 parity.
    out_dtype: output dtype (default: input dtype). Pass jnp.bfloat16 when the next
      layer consumes bf16 to halve output writeback traffic.
    """
    c_out = weight_oihw.shape[0]
    if out_dtype is None:
        out_dtype = x_nhwc.dtype
    if compute_dtype is None:
        compute_dtype = x_nhwc.dtype

    # Cast to the MXU compute dtype *before* building the im2col matrix so the
    # materialized patch matrix (and its HBM round trip) is half width in bf16.
    x_c = x_nhwc.astype(compute_dtype)
    # (OC, IC, KH, KW) -> (KH, KW, IC, OC) -> (K, OC) to match patch ordering.
    w_c = jnp.transpose(weight_oihw, (2, 3, 1, 0)).reshape(-1, c_out).astype(compute_dtype)

    a, (n, oh, ow) = _im2col_nhwc(x_c)
    out = _conv_matmul_leaky(a, w_c, jnp.dtype(out_dtype),
                             negative_slope=negative_slope)
    return out.reshape(n, oh, ow, c_out)


def downsample_forward(x_nchw, weight_oihw, *, compute_dtype=jnp.bfloat16,
                       out_dtype=None):
    """PyTorch-layout entry: x (N, C_in, H, W), weight (C_out, C_in, 4, 4) -> NCHW out.

    Prefer downsample_forward_nhwc inside an NHWC pipeline to avoid these transposes.
    """
    x_nhwc = jnp.transpose(x_nchw, (0, 2, 3, 1))
    y = downsample_forward_nhwc(x_nhwc, weight_oihw, compute_dtype=compute_dtype,
                                out_dtype=out_dtype)
    return jnp.transpose(y, (0, 3, 1, 2))


def _reference(x_nchw, weight_oihw):
    y = jax.lax.conv_general_dilated(
        x_nchw, weight_oihw, window_strides=(2, 2), padding=((1, 1), (1, 1)),
        dimension_numbers=("NCHW", "OIHW", "NCHW"))
    return jnp.where(y >= 0.0, y, 0.2 * y)


if __name__ == "__main__":
    key = jax.random.PRNGKey(0)
    kx1, kw1, kx2, kw2 = jax.random.split(key, 4)

    # Case 1: small early-layer shapes. K = 16*C_in = 64 <= tk -> single-K fast path.
    N, C_IN, H, W = 2, 4, 16, 16
    C_OUT = 8
    x = jax.random.normal(kx1, (N, C_IN, H, W), dtype=jnp.float32)
    bound = 1.0 / jnp.sqrt(jnp.float32(C_IN * 4 * 4))
    weight = jax.random.uniform(kw1, (C_OUT, C_IN, 4, 4), dtype=jnp.float32,
                                minval=-bound, maxval=bound)
    y_ref = _reference(x, weight)

    # f32 compute path: matches the PyTorch module's numerics closely.
    y_f32 = downsample_forward(x, weight, compute_dtype=jnp.float32)
    jax.block_until_ready(y_f32)
    assert y_f32.shape == (N, C_OUT, H // 2, W // 2), y_f32.shape
    assert jnp.allclose(y_f32, y_ref, atol=1e-4, rtol=1e-4), \
        float(jnp.max(jnp.abs(y_f32 - y_ref)))

    # Default bf16-MXU path (f32 accumulation): looser tolerance.
    y_bf16 = downsample_forward(x, weight)
    jax.block_until_ready(y_bf16)
    assert y_bf16.shape == (N, C_OUT, H // 2, W // 2), y_bf16.shape
    assert jnp.allclose(y_bf16, y_ref, atol=5e-2, rtol=5e-2), \
        float(jnp.max(jnp.abs(y_bf16 - y_ref)))

    # Case 2: deep-layer-like channels. K = 16*96 = 1536 > tk -> multi-K accumulator
    # path; also exercises lane-dense C_out padding and the bf16 out_dtype knob.
    N2, C_IN2, H2, W2, C_OUT2 = 1, 96, 8, 8, 160
    x2 = jax.random.normal(kx2, (N2, C_IN2, H2, W2), dtype=jnp.float32)
    bound2 = 1.0 / jnp.sqrt(jnp.float32(C_IN2 * 4 * 4))
    weight2 = jax.random.uniform(kw2, (C_OUT2, C_IN2, 4, 4), dtype=jnp.float32,
                                 minval=-bound2, maxval=bound2)
    y2_ref = _reference(x2, weight2)

    y2_f32 = downsample_forward(x2, weight2, compute_dtype=jnp.float32)
    jax.block_until_ready(y2_f32)
    assert y2_f32.shape == (N2, C_OUT2, H2 // 2, W2 // 2), y2_f32.shape
    assert jnp.allclose(y2_f32, y2_ref, atol=1e-3, rtol=1e-3), \
        float(jnp.max(jnp.abs(y2_f32 - y2_ref)))

    y2_bf16 = downsample_forward(x2, weight2, out_dtype=jnp.bfloat16)
    jax.block_until_ready(y2_bf16)
    assert y2_bf16.dtype == jnp.bfloat16
    assert jnp.allclose(y2_bf16.astype(jnp.float32), y2_ref, atol=5e-2, rtol=5e-2), \
        float(jnp.max(jnp.abs(y2_bf16.astype(jnp.float32) - y2_ref)))

    print("KERNEL_OK")
</pallas_src>

<mosaic_0001>
module attributes {stable_mosaic.version = 11 : i64} {
  func.func @_matmul_leaky_single_step_kernel(%arg0: i32, %arg1: i32, %arg2: memref<128x64xf32, #tpu.memory_space<vmem>>, %arg3: memref<64x128xf32, #tpu.memory_space<vmem>>, %arg4: memref<128x128xf32, #tpu.memory_space<vmem>>) attributes {dimension_semantics = [#tpu.dimension_semantics<parallel>, #tpu.dimension_semantics<parallel>], iteration_bounds = array<i64: 1, 1>, scalar_prefetch = 0 : i64, scratch_operands = 0 : i64, tpu.core_type = #tpu.core_type<tc>, window_params = [{transform_indices = @transform_0, window_bounds = array<i64: 128, 64>}, {transform_indices = @transform_1, window_bounds = array<i64: 64, 128>}, {transform_indices = @transform_2, window_bounds = array<i64: 128, 128>}]} {
    %c0 = arith.constant 0 : index
    %c0_0 = arith.constant 0 : index
    %0 = vector.load %arg2[%c0, %c0_0] : memref<128x64xf32, #tpu.memory_space<vmem>>, vector<128x64xf32>
    %c0_1 = arith.constant 0 : index
    %c0_2 = arith.constant 0 : index
    %1 = vector.load %arg3[%c0_1, %c0_2] : memref<64x128xf32, #tpu.memory_space<vmem>>, vector<64x128xf32>
    %cst = arith.constant dense<0.000000e+00> : vector<128x128xf32>
    %2 = tpu.matmul %0, %1, %cst {dimension_numbers = #tpu.dot_dimension_numbers<[1], [0], [0], [1], [0, 0, 1, 1], [], []>} : vector<128x64xf32>, vector<64x128xf32>, vector<128x128xf32> -> vector<128x128xf32>
    %cst_3 = arith.constant 0.000000e+00 : f32
    %3 = vector.broadcast %cst_3 : f32 to vector<128x128xf32>
    %4 = arith.cmpf oge, %2, %3 : vector<128x128xf32>
    %cst_4 = arith.constant 2.000000e-01 : f32
    %5 = vector.broadcast %cst_4 : f32 to vector<128x128xf32>
    %6 = arith.mulf %5, %2 : vector<128x128xf32>
    %7 = arith.select %4, %2, %6 : vector<128x128xi1>, vector<128x128xf32>
    %c0_5 = arith.constant 0 : index
    %c0_6 = arith.constant 0 : index
    %8 = vector.load %arg4[%c0_5, %c0_6] : memref<128x128xf32, #tpu.memory_space<vmem>>, vector<128x128xf32>
    tpu.vector_store %arg4[%c0_5, %c0_6], %7 {strides = array<i32>} : memref<128x128xf32, #tpu.memory_space<vmem>>, vector<128x128xf32>,
    return
  }
  func.func @transform_0(%arg0: i32, %arg1: i32) -> (i32, i32) {
    %c0_i32 = arith.constant 0 : i32
    %c0_i32_0 = arith.constant 0 : i32
    return %arg0, %c0_i32 : i32, i32
  }
  func.func @transform_1(%arg0: i32, %arg1: i32) -> (i32, i32) {
    %c0_i32 = arith.constant 0 : i32
    %c0_i32_0 = arith.constant 0 : i32
    return %c0_i32, %arg1 : i32, i32
  }
  func.func @transform_2(%arg0: i32, %arg1: i32) -> (i32, i32) {
    %c0_i32 = arith.constant 0 : i32
    return %arg0, %arg1 : i32, i32
  }
}

</mosaic_0001>

<llo_original>
// kernel: tpu_custom_call.1
$region0: #{tpu_custom_call.1}
  #allocation0 [shape = 'u32[]', space=smem, size = 0x4, offset = 0x4, fixed_abs, tag = 'smem constant byte address 0x4 - core index']
  #allocation1 [shape = 'u32[144,128]{1,0:T(1,128)}', space=vmem, size = 0x12000, scoped, tag = 'internal scratch']
  %s0 = inlined_call_operand.vmem [shape: f32[128,64], index: 0, kind: input, shape index: {}]
  %s1 = inlined_call_operand.vmem [shape: f32[64,128], index: 1, kind: input, shape index: {}]
  %s2 = inlined_call_operand.hbm [shape: f32[128,128], index: 2, kind: output, shape index: {}]
  %s3 = sld [smem:[#allocation0]]
  $region18: #{tpu_custom_call.1} parent=0
    _
  %s5 = ssub.s32 1, %s3
  %s6 = scalar_select 0, %s5, %s3
  $region1: #{tpu_custom_call.1} parent=0
    #allocation2 [shape = 'u8[65536]{0}', space=vmem, size = 0x10000, scoped, tag = 'output window, operand 0, single buffered']
    #allocation3 [shape = 's32[1]{0}', space=sflag, size = 0x4, scoped, tag = 'scoped memory for tpu_custom_call.1']
    %7 = vsyncpa [#allocation3], 0
    // Predicated region
    $region2: #{tpu_custom_call.1} parent=1 // pred_check
      _
    $region3: #{tpu_custom_call.1} parent=1 // pred_check_branch
      %9 = sbr.rel (0) target = $region5
    $region4: #{tpu_custom_call.1} parent=1 // pred_region
      _
    $region5: #{tpu_custom_call.1} parent=1 // pred_fallthru
      _
    // Predicated region
    $region6: #{tpu_custom_call.1} parent=1 // pred_check
      _
    $region7: #{tpu_custom_call.1} parent=1 // pred_check_branch
      %11 = sbr.rel (0) target = $region9
    $region8: #{tpu_custom_call.1} parent=1 // pred_region
      _
    $region9: #{tpu_custom_call.1} parent=1 // pred_fallthru
      _
    %v12 = vld [vmem:[%s0] sm:$0xff]
    %v13 = vld [vmem:[%s0 + $0x8] sm:$0xff]
    %v14 = vld [vmem:[%s0 + $0x10] sm:$0xff]
    %v15 = vld [vmem:[%s0 + $0x18] sm:$0xff]
    %v16 = vld [vmem:[%s0 + $0x20] sm:$0xff]
    %v17 = vld [vmem:[%s0 + $0x28] sm:$0xff]
    %v18 = vld [vmem:[%s0 + $0x30] sm:$0xff]
    %v19 = vld [vmem:[%s0 + $0x38] sm:$0xff]
    %v20 = vld [vmem:[%s0 + $0x40] sm:$0xff]
    %v21 = vld [vmem:[%s0 + $0x48] sm:$0xff]
    %v22 = vld [vmem:[%s0 + $0x50] sm:$0xff]
    %v23 = vld [vmem:[%s0 + $0x58] sm:$0xff]
    %v24 = vld [vmem:[%s0 + $0x60] sm:$0xff]
    %v25 = vld [vmem:[%s0 + $0x68] sm:$0xff]
    %v26 = vld [vmem:[%s0 + $0x70] sm:$0xff]
    %v27 = vld [vmem:[%s0 + $0x78] sm:$0xff]
    %v28 = vld [vmem:[%s1] sm:$0xff]
    %v29 = vld [vmem:[%s1 + $0x8] sm:$0xff]
    %v30 = vld [vmem:[%s1 + $0x10] sm:$0xff]
    %v31 = vld [vmem:[%s1 + $0x18] sm:$0xff]
    %v32 = vld [vmem:[%s1 + $0x20] sm:$0xff]
    %v33 = vld [vmem:[%s1 + $0x28] sm:$0xff]
    %v34 = vld [vmem:[%s1 + $0x30] sm:$0xff]
    %v35 = vld [vmem:[%s1 + $0x38] sm:$0xff]
    %vm36 = vcmask 523264
    %v38 = vsel %vm36, %v12, 0
    %v41 = vsel %vm36, %v13, 0
    %v44 = vsel %vm36, %v14, 0
    %v47 = vsel %vm36, %v15, 0
    %v50 = vsel %vm36, %v16, 0
    %v53 = vsel %vm36, %v17, 0
    %v56 = vsel %vm36, %v18, 0
    %v59 = vsel %vm36, %v19, 0
    %v62 = vsel %vm36, %v20, 0
    %v65 = vsel %vm36, %v21, 0
    %v68 = vsel %vm36, %v22, 0
    %v71 = vsel %vm36, %v23, 0
    %v74 = vsel %vm36, %v24, 0
    %v77 = vsel %vm36, %v25, 0
    %v80 = vsel %vm36, %v26, 0
    %v83 = vsel %vm36, %v27, 0
    %85 = vmatprep.subr.mxu0 0.0
    %86 = vmatpush1.msra.mxu0 %v28
    %87 = vmatprep.subr.mxu0 0.0
    %88 = vmatpush1.msra.mxu0 %v29
    %89 = vmatprep.subr.mxu0 0.0
    %90 = vmatpush1.msra.mxu0 %v30
    %91 = vmatprep.subr.mxu0 0.0
    %92 = vmatpush1.msra.mxu0 %v31
    %93 = vmatprep.subr.mxu0 0.0
    %94 = vmatpush1.msra.mxu0 %v32
    %95 = vmatprep.subr.mxu0 0.0
    %96 = vmatpush1.msra.mxu0 %v33
    %97 = vmatprep.subr.mxu0 0.0
    %98 = vmatpush1.msra.mxu0 %v34
    %99 = vmatprep.subr.mxu0 0.0
    %100 = vmatpush1.msra.mxu0 %v35
    %101 = vmatprep.subr.mxu0 0.0
    %102 = vmatpush1.msra.mxu0 0.0
    %103 = vmatprep.subr.mxu0 0.0
    %104 = vmatpush1.msra.mxu0 0.0
    %105 = vmatprep.subr.mxu0 0.0
    %106 = vmatpush1.msra.mxu0 0.0
    %107 = vmatprep.subr.mxu0 0.0
    %108 = vmatpush1.msra.mxu0 0.0
    %109 = vmatprep.subr.mxu0 0.0
    %110 = vmatpush1.msra.mxu0 0.0
    %111 = vmatprep.subr.mxu0 0.0
    %112 = vmatpush1.msra.mxu0 0.0
    %113 = vmatprep.subr.mxu0 0.0
    %114 = vmatpush1.msra.mxu0 0.0
    %115 = vmatprep.subr.mxu0 0.0
    %116 = vmatpush1.msra.mxu0 0.0
    %117 = vmatprep.subr.mxu0 0.0
    %118 = vmatpush1.msra.mxu0 0.0
    %119 = vmatprep.subr.mxu0 0.0
    %120 = vmatpush1.msra.mxu0 0.0
    %121 = vmatprep.subr.mxu0 0.0
    %122 = vmatpush1.msra.mxu0 0.0
    %123 = vmatprep.subr.mxu0 0.0
    %124 = vmatpush1.msra.mxu0 0.0
    %125 = vmatprep.subr.mxu0 0.0
    %126 = vmatpush1.msra.mxu0 0.0
    %127 = vmatprep.subr.mxu0 0.0
    %128 = vmatpush1.msra.mxu0 0.0
    %129 = vmatprep.subr.mxu0 0.0
    %130 = vmatpush1.msra.mxu0 0.0
    %131 = vmatprep.subr.mxu0 0.0
    %132 = vmatpush1.msra.mxu0 0.0
    %133 = vmatprep.subr.mxu0 0.0
    %134 = vmatpush1.msra.mxu0 0.0
    %135 = vmatprep.subr.mxu0 0.0
    %136 = vmatpush1.msra.mxu0 0.0
    %137 = vmatprep.subr.mxu0 0.0
    %138 = vmatpush1.msra.mxu0 0.0
    %139 = vmatprep.subr.mxu0 0.0
    %140 = vmatpush1.msra.mxu0 0.0
    %141 = vmatprep.subr.mxu0 0.0
    %142 = vmatpush1.msra.mxu0 0.0
    %143 = vmatprep.subr.mxu0 0.0
    %144 = vmatpush1.msra.mxu0 0.0
    %145 = vmatprep.subr.mxu0 0.0
    %146 = vmatpush1.msra.mxu0 0.0
    %147 = vmatprep.subr.mxu0 0.0
    %148 = vmatpush1.msra.mxu0 0.0
    %149 = vmatprep.mubr.f32.mxu0 0.0
    %150 = vmatmul.mubr.f32.gmra.mrb[0].mxu0 %v38
    %v151 = vpop.f32.mrb[0].mxu0
    %v152 = vadd.f32 0.0, %v151
    %v153 = vpop.f32.mrb[0].mxu0
    %154 = vmatprep.mubr.f32.mxu0 0.0
    %155 = vmatmul.mubr.f32.gmra.mrb[0].mxu0 %v41
    %v156 = vpop.f32.mrb[0].mxu0
    %v157 = vadd.f32 0.0, %v156
    %v158 = vpop.f32.mrb[0].mxu0
    %159 = vmatprep.mubr.f32.mxu0 0.0
    %160 = vmatmul.mubr.f32.gmra.mrb[0].mxu0 %v44
    %v161 = vpop.f32.mrb[0].mxu0
    %v162 = vadd.f32 0.0, %v161
    %v163 = vpop.f32.mrb[0].mxu0
    %164 = vmatprep.mubr.f32.mxu0 0.0
    %165 = vmatmul.mubr.f32.gmra.mrb[0].mxu0 %v47
    %v166 = vpop.f32.mrb[0].mxu0
    %v167 = vadd.f32 0.0, %v166
    %v168 = vpop.f32.mrb[0].mxu0
    %169 = vmatprep.mubr.f32.mxu0 0.0
    %170 = vmatmul.mubr.f32.gmra.mrb[0].mxu0 %v50
    %v171 = vpop.f32.mrb[0].mxu0
    %v172 = vadd.f32 0.0, %v171
    %v173 = vpop.f32.mrb[0].mxu0
    %174 = vmatprep.mubr.f32.mxu0 0.0
    %175 = vmatmul.mubr.f32.gmra.mrb[0].mxu0 %v53
    %v176 = vpop.f32.mrb[0].mxu0
    %v177 = vadd.f32 0.0, %v176
    %v178 = vpop.f32.mrb[0].mxu0
    %179 = vmatprep.mubr.f32.mxu0 0.0
    %180 = vmatmul.mubr.f32.gmra.mrb[0].mxu0 %v56
    %v181 = vpop.f32.mrb[0].mxu0
    %v182 = vadd.f32 0.0, %v181
    %v183 = vpop.f32.mrb[0].mxu0
    %184 = vmatprep.mubr.f32.mxu0 0.0
    %185 = vmatmul.mubr.f32.gmra.mrb[0].mxu0 %v59
    %v186 = vpop.f32.mrb[0].mxu0
    %v187 = vadd.f32 0.0, %v186
    %v188 = vpop.f32.mrb[0].mxu0
    %189 = vmatprep.mubr.f32.mxu0 0.0
    %190 = vmatmul.mubr.f32.gmra.mrb[0].mxu0 %v62
    %v191 = vpop.f32.mrb[0].mxu0
    %v192 = vadd.f32 0.0, %v191
    %v193 = vpop.f32.mrb[0].mxu0
    %194 = vmatprep.mubr.f32.mxu0 0.0
    %195 = vmatmul.mubr.f32.gmra.mrb[0].mxu0 %v65
    %v196 = vpop.f32.mrb[0].mxu0
    %v197 = vadd.f32 0.0, %v196
    %v198 = vpop.f32.mrb[0].mxu0
    %199 = vmatprep.mubr.f32.mxu0 0.0
    %200 = vmatmul.mubr.f32.gmra.mrb[0].mxu0 %v68
    %v201 = vpop.f32.mrb[0].mxu0
    %v202 = vadd.f32 0.0, %v201
    %v203 = vpop.f32.mrb[0].mxu0
    %204 = vmatprep.mubr.f32.mxu0 0.0
    %205 = vmatmul.mubr.f32.gmra.mrb[0].mxu0 %v71
    %v206 = vpop.f32.mrb[0].mxu0
    %v207 = vadd.f32 0.0, %v206
    %v208 = vpop.f32.mrb[0].mxu0
    %209 = vmatprep.mubr.f32.mxu0 0.0
    %210 = vmatmul.mubr.f32.gmra.mrb[0].mxu0 %v74
    %v211 = vpop.f32.mrb[0].mxu0
    %v212 = vadd.f32 0.0, %v211
    %v213 = vpop.f32.mrb[0].mxu0
    %214 = vmatprep.mubr.f32.mxu0 0.0
    %215 = vmatmul.mubr.f32.gmra.mrb[0].mxu0 %v77
    %v216 = vpop.f32.mrb[0].mxu0
    %v217 = vadd.f32 0.0, %v216
    %v218 = vpop.f32.mrb[0].mxu0
    %219 = vmatprep.mubr.f32.mxu0 0.0
    %220 = vmatmul.mubr.f32.gmra.mrb[0].mxu0 %v80
    %v221 = vpop.f32.mrb[0].mxu0
    %v222 = vadd.f32 0.0, %v221
    %v223 = vpop.f32.mrb[0].mxu0
    %224 = vmatprep.mubr.f32.mxu0 0.0
    %225 = vmatmul.mubr.f32.gmra.mrb[0].mxu0 %v83
    %v226 = vpop.f32.mrb[0].mxu0
    %v227 = vadd.f32 0.0, %v226
    %v228 = vpop.f32.mrb[0].mxu0
    %229 = vdwg.mxu0
    %vm230 = vcmp.ge.f32.partialorder %v152, 0.0
    %vm231 = vcmp.ge.f32.partialorder %v157, 0.0
    %vm232 = vcmp.ge.f32.partialorder %v162, 0.0
    %vm233 = vcmp.ge.f32.partialorder %v167, 0.0
    %vm234 = vcmp.ge.f32.partialorder %v172, 0.0
    %vm235 = vcmp.ge.f32.partialorder %v177, 0.0
    %vm236 = vcmp.ge.f32.partialorder %v182, 0.0
    %vm237 = vcmp.ge.f32.partialorder %v187, 0.0
    %vm238 = vcmp.ge.f32.partialorder %v192, 0.0
    %vm239 = vcmp.ge.f32.partialorder %v197, 0.0
    %vm240 = vcmp.ge.f32.partialorder %v202, 0.0
    %vm241 = vcmp.ge.f32.partialorder %v207, 0.0
    %vm242 = vcmp.ge.f32.partialorder %v212, 0.0
    %vm243 = vcmp.ge.f32.partialorder %v217, 0.0
    %vm244 = vcmp.ge.f32.partialorder %v222, 0.0
    %vm245 = vcmp.ge.f32.partialorder %v227, 0.0
    %v246 = vmul.f32 %v152, 0.2
    %v247 = vmul.f32 %v157, 0.2
    %v248 = vmul.f32 %v162, 0.2
    %v249 = vmul.f32 %v167, 0.2
    %v250 = vmul.f32 %v172, 0.2
    %v251 = vmul.f32 %v177, 0.2
    %v252 = vmul.f32 %v182, 0.2
    %v253 = vmul.f32 %v187, 0.2
    %v254 = vmul.f32 %v192, 0.2
    %v255 = vmul.f32 %v197, 0.2
    %v256 = vmul.f32 %v202, 0.2
    %v257 = vmul.f32 %v207, 0.2
    %v258 = vmul.f32 %v212, 0.2
    %v259 = vmul.f32 %v217, 0.2
    %v260 = vmul.f32 %v222, 0.2
    %v261 = vmul.f32 %v227, 0.2
    %v262 = vsel %vm230, %v152, %v246
    %v263 = vsel %vm231, %v157, %v247
    %v264 = vsel %vm232, %v162, %v248
    %v265 = vsel %vm233, %v167, %v249
    %v266 = vsel %vm234, %v172, %v250
    %v267 = vsel %vm235, %v177, %v251
    %v268 = vsel %vm236, %v182, %v252
    %v269 = vsel %vm237, %v187, %v253
    %v270 = vsel %vm238, %v192, %v254
    %v271 = vsel %vm239, %v197, %v255
    %v272 = vsel %vm240, %v202, %v256
    %v273 = vsel %vm241, %v207, %v257
    %v274 = vsel %vm242, %v212, %v258
    %v275 = vsel %vm243, %v217, %v259
    %v276 = vsel %vm244, %v222, %v260
    %v277 = vsel %vm245, %v227, %v261
    %278 = vst [vmem:[#allocation2] sm:$0xff] %v262
    %279 = vst [vmem:[#allocation2 + $0x8] sm:$0xff] %v263
    %280 = vst [vmem:[#allocation2 + $0x10] sm:$0xff] %v264
    %281 = vst [vmem:[#allocation2 + $0x18] sm:$0xff] %v265
    %282 = vst [vmem:[#allocation2 + $0x20] sm:$0xff] %v266
    %283 = vst [vmem:[#allocation2 + $0x28] sm:$0xff] %v267
    %284 = vst [vmem:[#allocation2 + $0x30] sm:$0xff] %v268
    %285 = vst [vmem:[#allocation2 + $0x38] sm:$0xff] %v269
    %286 = vst [vmem:[#allocation2 + $0x40] sm:$0xff] %v270
    %287 = vst [vmem:[#allocation2 + $0x48] sm:$0xff] %v271
    %288 = vst [vmem:[#allocation2 + $0x50] sm:$0xff] %v272
    %289 = vst [vmem:[#allocation2 + $0x58] sm:$0xff] %v273
    %290 = vst [vmem:[#allocation2 + $0x60] sm:$0xff] %v274
    %291 = vst [vmem:[#allocation2 + $0x68] sm:$0xff] %v275
    %292 = vst [vmem:[#allocation2 + $0x70] sm:$0xff] %v276
    %293 = vst [vmem:[#allocation2 + $0x78] sm:$0xff] %v277
    // Predicated region
    $region10: #{tpu_custom_call.1} parent=1 // pred_check
      _
    $region11: #{tpu_custom_call.1} parent=1 // pred_check_branch
      %295 = sbr.rel (0) target = $region13
    $region12: #{tpu_custom_call.1} parent=1 // pred_region
      %s297 = ssub.s32 2048, 2048
      %298 = vsyncadd [#allocation3], %s297
      %s299 = sshll.u32 [#allocation2], 4
      %s300 = int_to_ptr.vmem [resolvable:$true] %s299
      %305 = dma.vmem_to_hbm [thread:$0]  %s300, 2048, %s2, [#allocation3], 128, 128, 8
    $region13: #{tpu_custom_call.1} parent=1 // pred_fallthru
      _
    // Predicated region
    $region14: #{tpu_custom_call.1} parent=1 // pred_check
      _
    $region15: #{tpu_custom_call.1} parent=1 // pred_check_branch
      %307 = sbr.rel (0) target = $region17
    $region16: #{tpu_custom_call.1} parent=1 // pred_region
      %308 = dma.done [#allocation3], 2048
    $region17: #{tpu_custom_call.1} parent=1 // pred_fallthru
      _
    %309 = vsyncpa [#allocation3], 1

</llo_original>
